<compile_context>
chip_gen: v7x
topology: tpu7x:2x2x1
jax: 0.10.0
libtpu: 0.0.40
codegen_flags: <defaults>
</compile_context>

<pallas_src>
import functools

import jax
import jax.numpy as jnp
from jax.experimental import pallas as pl
from jax.experimental.pallas import tpu as pltpu


def _round_up(x, m):
    return (x + m - 1) // m * m


def _tile_padded_bytes(shape, dtype):
    """(8,128)-tile-padded VMEM footprint of a block (what the HW really uses)."""
    itemsize = jnp.dtype(dtype).itemsize
    packing = max(1, 4 // itemsize)          # sub-32-bit dtypes pack along sublanes
    dims = (1, 1) + tuple(int(d) for d in shape)
    lead = 1
    for d in dims[:-2]:
        lead *= d
    sub = _round_up(dims[-2], 8 * packing)
    lane = _round_up(dims[-1], 128)
    return lead * sub * lane * itemsize


def _mfm_kernel(x_ref, w_ref, b_ref, out_ref, *, KH, KW, Wp, M, Bt, out_channels):
    # x_ref:   (Bt, Cin_p, Lf)          flattened spatially-padded NCHW images
    # w_ref:   (2*out_ch, KH*KW*Cin_p)  fused 2-D weight (both halves)
    # b_ref:   (2*out_ch, 1)            bias, f32
    # out_ref: (Bt, out_ch, M)          M = Ho*Wp, lane-dense spatial output
    w = w_ref[...]
    b = b_ref[...]
    for bi in range(Bt):                                    # static unroll over images
        xb = x_ref[bi]                                      # (Cin_p, Lf)
        taps = []
        for kh in range(KH):
            for kw in range(KW):
                off = kh * Wp + kw
                taps.append(xb[:, off:off + M])             # (Cin_p, M) shifted slice
        rhs = jnp.concatenate(taps, axis=0)                 # (KH*KW*Cin_p, M)
        # single fused MXU matmul, f32 accumulate
        acc = jnp.dot(w, rhs, preferred_element_type=jnp.float32)   # (2*out_ch, M)
        acc = acc + b                                        # f32 bias add
        # MFM nonlinearity: sublane-aligned half split (out_ch multiple of 8)
        y = jnp.maximum(acc[:out_channels, :], acc[out_channels:, :])
        out_ref[bi] = y.astype(out_ref.dtype)


def mfm_conv(x, weight, bias, *, out_channels, kernel_size=3, stride=1,
             padding=1, compute_dtype=None, batch_tile=None):
    """mfm type=1 forward.  x: (N, Cin, H, W) NCHW.  Returns NCHW (N, out_ch, H, W)."""
    assert stride == 1, "this kernel implements the stride=1 path"
    N, Cin, H, W = x.shape
    KH = KW = kernel_size
    two_cout = 2 * out_channels
    assert weight.shape == (two_cout, Cin, KH, KW)
    assert bias.shape == (two_cout,)

    Hp, Wp = H + 2 * padding, W + 2 * padding
    Ho, Wo = Hp - KH + 1, Wp - KW + 1
    M = Ho * Wp                          # lane-dense matmul width (wrap cols dropped later)
    Lf = Hp * Wp + (KW - 1)              # flat length so every tap slice stays in range
    Cin_p = _round_up(Cin, 8)            # sublane-aligned channel dim
    K9 = KH * KW * Cin_p

    cdt = jnp.dtype(compute_dtype) if compute_dtype is not None else jnp.dtype(x.dtype)

    # ---- image: channel-pad + spatial zero-pad + flatten (NCHW-native, no transpose) ----
    xp = jnp.pad(x, ((0, 0), (0, Cin_p - Cin),
                     (padding, padding), (padding, padding)))        # (N, Cin_p, Hp, Wp)
    xf = jnp.pad(xp.reshape(N, Cin_p, Hp * Wp),
                 ((0, 0), (0, 0), (0, Lf - Hp * Wp))).astype(cdt)     # (N, Cin_p, Lf)

    # ---- weights: OIHW -> single fused 2-D (2*out_ch, KH*KW*Cin_p) matrix ----
    wpad = jnp.pad(weight, ((0, 0), (0, Cin_p - Cin), (0, 0), (0, 0)))
    w2 = jnp.transpose(wpad, (0, 2, 3, 1)).reshape(two_cout, K9).astype(cdt)
    b2 = bias.reshape(two_cout, 1).astype(jnp.float32)

    # ---- batch tile: amortize per-step overhead, keep >=2 grid steps for megacore ----
    in_img = _tile_padded_bytes((Cin_p, Lf), cdt)
    out_img = _tile_padded_bytes((out_channels, M), x.dtype)
    if batch_tile is None:
        budget = 4 << 20
        batch_tile = 1
        for bt in range(1, N + 1):
            if N % bt:
                continue
            if N >= 2 and N // bt < 2:          # v7x: keep both TCs busy
                continue
            if bt * 2 * (in_img + out_img) > budget:
                continue
            batch_tile = bt
    Bt = batch_tile
    assert N % Bt == 0
    grid = (N // Bt,)

    # ---- VMEM budget from tile-PADDED footprints, generation-aware cap ----
    need = (2 * Bt * (in_img + out_img)                       # double-buffered in/out
            + 2 * _tile_padded_bytes((two_cout, K9), cdt)     # resident weight
            + 2 * _tile_padded_bytes((two_cout, 1), jnp.float32))
    try:
        vmem_cap = int(pltpu.get_tpu_info().vmem_capacity_bytes)
    except Exception:
        vmem_cap = 64 << 20                                   # conservative (v7x per-TC)
    vmem_limit = int(min(max(4 * need + (8 << 20), 32 << 20), vmem_cap * 3 // 4))

    kernel = functools.partial(_mfm_kernel, KH=KH, KW=KW, Wp=Wp, M=M, Bt=Bt,
                               out_channels=out_channels)

    out_flat = pl.pallas_call(
        kernel,
        out_shape=jax.ShapeDtypeStruct((N, out_channels, M), x.dtype),
        grid_spec=pltpu.PrefetchScalarGridSpec(
            num_scalar_prefetch=0,
            grid=grid,
            in_specs=[
                pl.BlockSpec((Bt, Cin_p, Lf), lambda g: (g, 0, 0)),
                pl.BlockSpec((two_cout, K9), lambda g: (0, 0)),    # resident
                pl.BlockSpec((two_cout, 1), lambda g: (0, 0)),     # resident
            ],
            out_specs=pl.BlockSpec((Bt, out_channels, M), lambda g: (g, 0, 0)),
        ),
        compiler_params=pltpu.CompilerParams(
            dimension_semantics=("parallel",),
            vmem_limit_bytes=vmem_limit),
    )(xf, w2, b2)

    # Drop the row-wrap columns (j in [Wo, Wp)); result is already native NCHW.
    return out_flat.reshape(N, out_channels, Ho, Wp)[:, :, :, :Wo]


def _reference(x, weight, bias, out_channels, padding=1):
    y = jax.lax.conv_general_dilated(
        x, weight, window_strides=(1, 1),
        padding=[(padding, padding), (padding, padding)],
        dimension_numbers=("NCHW", "OIHW", "NCHW"))
    y = y + bias.reshape(1, -1, 1, 1)
    return jnp.maximum(y[:, :out_channels], y[:, out_channels:])


if __name__ == "__main__":
    # mfm(in_channels=4, out_channels=8, kernel_size=3, stride=1, padding=1, type=1)
    N, Cin, H, W = 2, 4, 16, 16
    out_channels = 8
    KH = KW = 3

    key = jax.random.PRNGKey(0)
    kx, kw, kb = jax.random.split(key, 3)
    x = jax.random.normal(kx, (N, Cin, H, W), dtype=jnp.float32)
    weight = jax.random.normal(kw, (2 * out_channels, Cin, KH, KW), dtype=jnp.float32) * 0.1
    bias = jax.random.normal(kb, (2 * out_channels,), dtype=jnp.float32) * 0.1

    ref = _reference(x, weight, bias, out_channels)

    # f32 path (tight match vs reference conv)
    out = mfm_conv(x, weight, bias, out_channels=out_channels)
    out = jax.block_until_ready(out)
    assert out.shape == (N, out_channels, H, W), out.shape
    assert jnp.allclose(out, ref, atol=1e-4, rtol=1e-4), "f32 mismatch vs reference conv"

    # bf16 operand path (MXU-native on v6e/v7x); f32 accumulation bounds the error
    out_bf16 = mfm_conv(x, weight, bias, out_channels=out_channels,
                        compute_dtype=jnp.bfloat16)
    out_bf16 = jax.block_until_ready(out_bf16)
    assert out_bf16.shape == (N, out_channels, H, W), out_bf16.shape
    assert jnp.allclose(out_bf16, ref, atol=3e-2, rtol=3e-2), "bf16 mismatch vs reference conv"

    print("KERNEL_OK")
</pallas_src>

<mosaic_0001>
module attributes {stable_mosaic.version = 11 : i64} {
  func.func @_mfm_kernel(%arg0: i32, %arg1: memref<1x8x326xf32, #tpu.memory_space<vmem>>, %arg2: memref<16x72xf32, #tpu.memory_space<vmem>>, %arg3: memref<16x1xf32, #tpu.memory_space<vmem>>, %arg4: memref<1x8x288xf32, #tpu.memory_space<vmem>>) attributes {dimension_semantics = [#tpu.dimension_semantics<parallel>], iteration_bounds = array<i64: 2>, scalar_prefetch = 0 : i64, scratch_operands = 0 : i64, tpu.core_type = #tpu.core_type<tc>, window_params = [{transform_indices = @transform_0, window_bounds = array<i64: 1, 8, 326>}, {pipeline_mode = #tpu.pipeline_mode<synchronous>, transform_indices = @transform_1, window_bounds = array<i64: 16, 72>}, {pipeline_mode = #tpu.pipeline_mode<synchronous>, transform_indices = @transform_2, window_bounds = array<i64: 16, 1>}, {transform_indices = @transform_3, window_bounds = array<i64: 1, 8, 288>}]} {
    %c0 = arith.constant 0 : index
    %c0_0 = arith.constant 0 : index
    %0 = vector.load %arg2[%c0, %c0_0] : memref<16x72xf32, #tpu.memory_space<vmem>>, vector<16x72xf32>
    %c0_1 = arith.constant 0 : index
    %c0_2 = arith.constant 0 : index
    %1 = vector.load %arg3[%c0_1, %c0_2] : memref<16x1xf32, #tpu.memory_space<vmem>>, vector<16x1xf32>
    %c0_3 = arith.constant 0 : index
    %c0_4 = arith.constant 0 : index
    %c0_5 = arith.constant 0 : index
    %2 = vector.load %arg1[%c0_3, %c0_4, %c0_5] : memref<1x8x326xf32, #tpu.memory_space<vmem>>, vector<1x8x326xf32>
    %3 = vector.shape_cast %2 : vector<1x8x326xf32> to vector<8x326xf32>
    %4 = vector.extract_strided_slice %3 {offsets = [0, 0], sizes = [8, 288], strides = [1, 1]} : vector<8x326xf32> to vector<8x288xf32>
    %5 = vector.extract_strided_slice %3 {offsets = [0, 1], sizes = [8, 288], strides = [1, 1]} : vector<8x326xf32> to vector<8x288xf32>
    %6 = vector.extract_strided_slice %3 {offsets = [0, 2], sizes = [8, 288], strides = [1, 1]} : vector<8x326xf32> to vector<8x288xf32>
    %7 = vector.extract_strided_slice %3 {offsets = [0, 18], sizes = [8, 288], strides = [1, 1]} : vector<8x326xf32> to vector<8x288xf32>
    %8 = vector.extract_strided_slice %3 {offsets = [0, 19], sizes = [8, 288], strides = [1, 1]} : vector<8x326xf32> to vector<8x288xf32>
    %9 = vector.extract_strided_slice %3 {offsets = [0, 20], sizes = [8, 288], strides = [1, 1]} : vector<8x326xf32> to vector<8x288xf32>
    %10 = vector.extract_strided_slice %3 {offsets = [0, 36], sizes = [8, 288], strides = [1, 1]} : vector<8x326xf32> to vector<8x288xf32>
    %11 = vector.extract_strided_slice %3 {offsets = [0, 37], sizes = [8, 288], strides = [1, 1]} : vector<8x326xf32> to vector<8x288xf32>
    %12 = vector.extract_strided_slice %3 {offsets = [0, 38], sizes = [8, 288], strides = [1, 1]} : vector<8x326xf32> to vector<8x288xf32>
    %13 = tpu.concatenate %4, %5, %6, %7, %8, %9, %10, %11, %12 in 0 : vector<8x288xf32>, vector<8x288xf32>, vector<8x288xf32>, vector<8x288xf32>, vector<8x288xf32>, vector<8x288xf32>, vector<8x288xf32>, vector<8x288xf32>, vector<8x288xf32> -> vector<72x288xf32>
    %cst = arith.constant dense<0.000000e+00> : vector<16x288xf32>
    %14 = tpu.matmul %0, %13, %cst {dimension_numbers = #tpu.dot_dimension_numbers<[1], [0], [0], [1], [0, 0, 1, 1], [], []>} : vector<16x72xf32>, vector<72x288xf32>, vector<16x288xf32> -> vector<16x288xf32>
    %15 = vector.broadcast %1 : vector<16x1xf32> to vector<16x288xf32>
    %16 = arith.addf %14, %15 : vector<16x288xf32>
    %17 = vector.extract_strided_slice %16 {offsets = [0, 0], sizes = [8, 288], strides = [1, 1]} : vector<16x288xf32> to vector<8x288xf32>
    %18 = vector.extract_strided_slice %16 {offsets = [8, 0], sizes = [8, 288], strides = [1, 1]} : vector<16x288xf32> to vector<8x288xf32>
    %19 = arith.maximumf %17, %18 : vector<8x288xf32>
    %c0_6 = arith.constant 0 : index
    %c0_7 = arith.constant 0 : index
    %c0_8 = arith.constant 0 : index
    %20 = vector.load %arg4[%c0_6, %c0_7, %c0_8] : memref<1x8x288xf32, #tpu.memory_space<vmem>>, vector<1x8x288xf32>
    %21 = vector.shape_cast %20 : vector<1x8x288xf32> to vector<8x288xf32>
    %22 = vector.shape_cast %19 : vector<8x288xf32> to vector<1x8x288xf32>
    tpu.vector_store %arg4[%c0_6, %c0_7, %c0_8], %22 {strides = array<i32>} : memref<1x8x288xf32, #tpu.memory_space<vmem>>, vector<1x8x288xf32>,
    return
  }
  func.func @transform_0(%arg0: i32) -> (i32, i32, i32) {
    %c0_i32 = arith.constant 0 : i32
    %c0_i32_0 = arith.constant 0 : i32
    %c0_i32_1 = arith.constant 0 : i32
    return %arg0, %c0_i32, %c0_i32_0 : i32, i32, i32
  }
  func.func @transform_1(%arg0: i32) -> (i32, i32) {
    %c0_i32 = arith.constant 0 : i32
    %c0_i32_0 = arith.constant 0 : i32
    %c0_i32_1 = arith.constant 0 : i32
    return %c0_i32, %c0_i32_0 : i32, i32
  }
  func.func @transform_2(%arg0: i32) -> (i32, i32) {
    %c0_i32 = arith.constant 0 : i32
    %c0_i32_0 = arith.constant 0 : i32
    %c0_i32_1 = arith.constant 0 : i32
    return %c0_i32, %c0_i32_0 : i32, i32
  }
  func.func @transform_3(%arg0: i32) -> (i32, i32, i32) {
    %c0_i32 = arith.constant 0 : i32
    %c0_i32_0 = arith.constant 0 : i32
    %c0_i32_1 = arith.constant 0 : i32
    return %arg0, %c0_i32, %c0_i32_0 : i32, i32, i32
  }
}

</mosaic_0001>

<llo_original>
// kernel: tpu_custom_call.1
$region0: #{tpu_custom_call.1}
  #allocation0 [shape = 'u32[]', space=smem, size = 0x4, offset = 0x4, fixed_abs, tag = 'smem constant byte address 0x4 - core index']
  #allocation1 [shape = 'u32[144,128]{1,0:T(1,128)}', space=vmem, size = 0x12000, scoped, tag = 'internal scratch']
  %s0 = inlined_call_operand.hbm [shape: f32[2,8,326], index: 0, kind: input, shape index: {}]
  %s1 = inlined_call_operand.vmem [shape: f32[16,72], index: 1, kind: input, shape index: {}]
  %s2 = inlined_call_operand.vmem [shape: f32[16,1], index: 2, kind: input, shape index: {}]
  %s3 = inlined_call_operand.hbm [shape: f32[2,8,288], index: 3, kind: output, shape index: {}]
  %s4 = sld [smem:[#allocation0]]
  $region49: #{tpu_custom_call.1} parent=0
    _
  %s6 = ssub.s32 1, %s4
  %s7 = scalar_select 0, %s6, %s4
  $region1: #{tpu_custom_call.1} parent=0
    #allocation2 [shape = 'u8[24576]{0}', space=vmem, size = 0x6000, scoped, tag = 'input window, operand 0']
    #allocation3 [shape = 's32[2]{0}', space=sflag, size = 0x8, scoped, tag = 'scoped memory for tpu_custom_call.1']
    #allocation4 [shape = 's32[2]{0}', space=sflag, size = 0x8, scoped, tag = 'scoped memory for tpu_custom_call.1']
    #allocation5 [shape = 'u8[24576]{0}', space=vmem, size = 0x6000, scoped, tag = 'output window, operand 0']
    %8 = vsyncpa [#allocation3], 0
    %s9 = scalar_lea.sflag [#allocation3], 1
    %10 = vsyncpa %s9, 0
    %11 = vsyncpa [#allocation4], 0
    %s12 = scalar_lea.sflag [#allocation4], 1
    %13 = vsyncpa %s12, 0
    loop: start=0, step=1, limit=4
    $region2: #{tpu_custom_call.1} parent=1 // loop_pre_header
      _
    $region3: #{tpu_custom_call.1} parent=1 // loop_header
      %s15 = sphi 0, %s19
      %p16 = scmp.ge.s32.totalorder %s15, 4
      %s25 = sphi 0, %s27
      %s28 = sphi 0, %s25
      %s29 = sphi 0, %s28
      %s45 = sphi 0, %s29
      %s49 = sphi 0, %s49
      %s51 = sphi 0, %s49
      %s52 = sphi 0, %s51
      %s66 = sphi 0, %s52
      %s70 = sphi 0, %s70
      %s72 = sphi 0, %s70
      %s73 = sphi 0, %s72
      %s87 = sphi 0, %s73
      %s93 = sphi 0, %s95
      %s96 = sphi 0, %s93
      %s97 = sphi 0, %s96
      %s113 = sphi 0, %s97
    $region4: #{tpu_custom_call.1} parent=1 // loop_header_branch
      %18 = sbr.rel (%p16) target = $region8
    $region5: #{tpu_custom_call.1} parent=1 // loop_body
      %s20 = ssub.s32 %s15, 1
      %s21 = ssub.s32 %s15, 2
      %s22 = sadd.s32 %s15, 1
      %s23 = ssub.s32 %s15, %s22
      %p24 = scmp.eq.s32.totalorder %s23, 0
      %s26 = sadd.s32 %s25, 1
      %s27 = scalar_select %p24, %s25, %s26
      %p30 = pneg %p24
      %p31 = scmp.eq.s32.totalorder %s15, 1
      %p32 = por %p30, %p31
      %p33 = scmp.ne.s32.totalorder %s25, %s28
      %p34 = scmp.eq.s32.totalorder %s15, 0
      %p35 = por %p33, %p34
      %p36 = scmp.ne.s32.totalorder %s25, %s28
      %p37 = scmp.eq.s32.totalorder %s20, 1
      %p38 = por %p36, %p37
      %p39 = scmp.ne.s32.totalorder %s28, %s29
      %p40 = scmp.eq.s32.totalorder %s20, 0
      %p41 = por %p39, %p40
      %p42 = scmp.ne.s32.totalorder %s28, %s29
      %p43 = scmp.eq.s32.totalorder %s21, 1
      %p44 = por %p42, %p43
      %p46 = scmp.ne.s32.totalorder %s29, %s45
      %p47 = scmp.eq.s32.totalorder %s21, 0
      %p48 = por %p46, %p47
      %s50 = sadd.s32 %s49, 1
      %p53 = scmp.eq.s32.totalorder %s15, 1
      %p54 = scmp.ne.s32.totalorder %s49, %s51
      %p55 = scmp.eq.s32.totalorder %s15, 0
      %p56 = por %p54, %p55
      %p57 = scmp.ne.s32.totalorder %s49, %s51
      %p58 = scmp.eq.s32.totalorder %s20, 1
      %p59 = por %p57, %p58
      %p60 = scmp.ne.s32.totalorder %s51, %s52
      %p61 = scmp.eq.s32.totalorder %s20, 0
      %p62 = por %p60, %p61
      %p63 = scmp.ne.s32.totalorder %s51, %s52
      %p64 = scmp.eq.s32.totalorder %s21, 1
      %p65 = por %p63, %p64
      %p67 = scmp.ne.s32.totalorder %s52, %s66
      %p68 = scmp.eq.s32.totalorder %s21, 0
      %p69 = por %p67, %p68
      %s71 = sadd.s32 %s70, 1
      %p74 = scmp.eq.s32.totalorder %s15, 1
      %p75 = scmp.ne.s32.totalorder %s70, %s72
      %p76 = scmp.eq.s32.totalorder %s15, 0
      %p77 = por %p75, %p76
      %p78 = scmp.ne.s32.totalorder %s70, %s72
      %p79 = scmp.eq.s32.totalorder %s20, 1
      %p80 = por %p78, %p79
      %p81 = scmp.ne.s32.totalorder %s72, %s73
      %p82 = scmp.eq.s32.totalorder %s20, 0
      %p83 = por %p81, %p82
      %p84 = scmp.ne.s32.totalorder %s72, %s73
      %p85 = scmp.eq.s32.totalorder %s21, 1
      %p86 = por %p84, %p85
      %p88 = scmp.ne.s32.totalorder %s73, %s87
      %p89 = scmp.eq.s32.totalorder %s21, 0
      %p90 = por %p88, %p89
      %s91 = ssub.s32 %s15, %s22
      %p92 = scmp.eq.s32.totalorder %s91, 0
      %s94 = sadd.s32 %s93, 1
      %s95 = scalar_select %p92, %s93, %s94
      %p98 = pneg %p92
      %p99 = scmp.eq.s32.totalorder %s15, 1
      %p100 = por %p98, %p99
      %p101 = scmp.ne.s32.totalorder %s93, %s96
      %p102 = scmp.eq.s32.totalorder %s15, 0
      %p103 = por %p101, %p102
      %p104 = scmp.ne.s32.totalorder %s93, %s96
      %p105 = scmp.eq.s32.totalorder %s20, 1
      %p106 = por %p104, %p105
      %p107 = scmp.ne.s32.totalorder %s96, %s97
      %p108 = scmp.eq.s32.totalorder %s20, 0
      %p109 = por %p107, %p108
      %p110 = scmp.ne.s32.totalorder %s96, %s97
      %p111 = scmp.eq.s32.totalorder %s21, 1
      %p112 = por %p110, %p111
      %p114 = scmp.ne.s32.totalorder %s97, %s113
      %p115 = scmp.eq.s32.totalorder %s21, 0
      %p116 = por %p114, %p115
      %p117 = scmp.le.s32.totalorder 1, %s15
      %p118 = scmp.lt.s32.totalorder %s15, 3
      %p119 = pnand %p117, %p118
      %p120 = pneg %p119
      // Predicated region
      $region9: #{tpu_custom_call.1} parent=5 // pred_check
        _
      $region10: #{tpu_custom_call.1} parent=5 // pred_check_branch
        %122 = sbr.rel (%p119) target = $region12
      $region11: #{tpu_custom_call.1} parent=5 // pred_region
        %s123 = ssub.s32 %s15, 1
        // Predicated region
        $region13: #{tpu_custom_call.1} parent=11 // pred_check
          %p124 = pneg %p62
        $region14: #{tpu_custom_call.1} parent=11 // pred_check_branch
          %126 = sbr.rel (%p124) target = $region16
        $region15: #{tpu_custom_call.1} parent=11 // pred_region
          _
        $region16: #{tpu_custom_call.1} parent=11 // pred_fallthru
          _
        // Predicated region
        $region17: #{tpu_custom_call.1} parent=11 // pred_check
          %p127 = pneg %p83
        $region18: #{tpu_custom_call.1} parent=11 // pred_check_branch
          %129 = sbr.rel (%p127) target = $region20
        $region19: #{tpu_custom_call.1} parent=11 // pred_region
          _
        $region20: #{tpu_custom_call.1} parent=11 // pred_fallthru
          _
      $region12: #{tpu_custom_call.1} parent=5 // pred_fallthru
        _
      %p130 = scmp.lt.s32.totalorder %s15, 2
      // Predicated region
      $region21: #{tpu_custom_call.1} parent=5 // pred_check
        %p131 = pneg %p130
      $region22: #{tpu_custom_call.1} parent=5 // pred_check_branch
        %133 = sbr.rel (%p131) target = $region24
      $region23: #{tpu_custom_call.1} parent=5 // pred_region
        // Predicated region
        $region25: #{tpu_custom_call.1} parent=23 // pred_check
          %p134 = pneg %p35
        $region26: #{tpu_custom_call.1} parent=23 // pred_check_branch
          %136 = sbr.rel (%p134) target = $region28
        $region27: #{tpu_custom_call.1} parent=23 // pred_region
          %s137 = sand.u32 %s25, 1
          %s138 = scalar_lea.sflag [#allocation3], %s137
          %s139 = sand.u32 %s25, 1
          %s140 = smul.addr %s139, 24
          %s141 = scalar_lea.vmem [#allocation2], %s140
          %s143 = ssub.s32 384, 384
          %144 = vsyncadd %s138, %s143
          %s145 = smul.addr %s15, 3
          %s146 = smul.addr %s145, 128
          %s147 = scalar_lea.hbm %s0, %s146
          %s149 = sshll.u32 %s141, 4
          %s150 = int_to_ptr.vmem [resolvable:$true] %s149
          %152 = dma.hbm_to_vmem [thread:$0]  %s147, 384, %s150, %s138
        $region28: #{tpu_custom_call.1} parent=23 // pred_fallthru
          _
      $region24: #{tpu_custom_call.1} parent=5 // pred_fallthru
        _
      %p153 = scmp.le.s32.totalorder 1, %s15
      %p154 = scmp.lt.s32.totalorder %s15, 3
      %p155 = pnand %p153, %p154
      %p156 = pneg %p155
      // Predicated region
      $region29: #{tpu_custom_call.1} parent=5 // pred_check
        _
      $region30: #{tpu_custom_call.1} parent=5 // pred_check_branch
        %158 = sbr.rel (%p155) target = $region32
      $region31: #{tpu_custom_call.1} parent=5 // pred_region
        %s159 = ssub.s32 %s15, 1
        %s160 = sand.u32 %s28, 1
        %s161 = scalar_lea.sflag [#allocation3], %s160
        %s162 = sand.u32 %s28, 1
        %s163 = smul.addr %s162, 24
        %s164 = scalar_lea.vmem [#allocation2], %s163
        // Predicated region
        $region33: #{tpu_custom_call.1} parent=31 // pred_check
          %p165 = pneg %p41
        $region34: #{tpu_custom_call.1} parent=31 // pred_check_branch
          %167 = sbr.rel (%p165) target = $region36
        $region35: #{tpu_custom_call.1} parent=31 // pred_region
          %168 = dma.done %s161, 384
        $region36: #{tpu_custom_call.1} parent=31 // pred_fallthru
          _
        %s169 = sand.u32 %s28, 1
        %s170 = scalar_lea.sflag [#allocation3], %s169
        %s171 = sand.u32 %s28, 1
        %s172 = smul.addr %s171, 24
        %s173 = scalar_lea.vmem [#allocation2], %s172
        %p174 = pneg %p41
        %p175 = pneg %p38
        %p176 = pneg %p62
        %p177 = pneg %p59
        %p178 = pneg %p83
        %p179 = pneg %p80
        %p180 = pneg %p109
        %p181 = pneg %p106
        %s182 = sand.u32 %s96, 1
        %s183 = scalar_lea.sflag [#allocation4], %s182
        %s184 = sand.u32 %s96, 1
        %s185 = smul.addr %s184, 24
        %s186 = scalar_lea.vmem [#allocation5], %s185
        %v187 = vld [vmem:[%s1] sm:$0xff]
        %v188 = vld [vmem:[%s1 + $0x8] sm:$0xff]
        %v189 = vld [vmem:[%s2] sm:$0xff]
        %v190 = vld [vmem:[%s2 + $0x8] sm:$0xff]
        %v191 = vld [vmem:[%s164] sm:$0xff]
        %v192 = vld [vmem:[%s164 + $0x8] sm:$0xff]
        %v193 = vld [vmem:[%s164 + $0x10] sm:$0xff]
        %197 = vrot.lane.b32.xlu0 %v191, 127
        %v198 = vpop.permute.xlu0 %197
        %199 = vrot.lane.b32.xlu0 %v192, 127
        %v200 = vpop.permute.xlu0 %199
        %201 = vrot.lane.b32.xlu0 %v193, 127
        %v202 = vpop.permute.xlu0 %201
        %vm203 = vcmask 1039360
        %v204 = vsel %vm203, %v198, %v200
        %v205 = vsel %vm203, %v200, %v202
        %209 = vrot.lane.b32.xlu0 %v191, 126
        %v210 = vpop.permute.xlu0 %209
        %211 = vrot.lane.b32.xlu0 %v192, 126
        %v212 = vpop.permute.xlu0 %211
        %213 = vrot.lane.b32.xlu0 %v193, 126
        %v214 = vpop.permute.xlu0 %213
        %vm215 = vcmask 1031168
        %v216 = vsel %vm215, %v210, %v212
        %v217 = vsel %vm215, %v212, %v214
        %221 = vrot.lane.b32.xlu0 %v191, 110
        %v222 = vpop.permute.xlu0 %221
        %223 = vrot.lane.b32.xlu0 %v192, 110
        %v224 = vpop.permute.xlu0 %223
        %225 = vrot.lane.b32.xlu0 %v193, 110
        %v226 = vpop.permute.xlu0 %225
        %vm227 = vcmask 900096
        %v228 = vsel %vm227, %v222, %v224
        %v229 = vsel %vm227, %v224, %v226
        %233 = vrot.lane.b32.xlu0 %v191, 109
        %v234 = vpop.permute.xlu0 %233
        %235 = vrot.lane.b32.xlu0 %v192, 109
        %v236 = vpop.permute.xlu0 %235
        %237 = vrot.lane.b32.xlu0 %v193, 109
        %v238 = vpop.permute.xlu0 %237
        %vm239 = vcmask 891904
        %v240 = vsel %vm239, %v234, %v236
        %v241 = vsel %vm239, %v236, %v238
        %245 = vrot.lane.b32.xlu0 %v191, 108
        %v246 = vpop.permute.xlu0 %245
        %247 = vrot.lane.b32.xlu0 %v192, 108
        %v248 = vpop.permute.xlu0 %247
        %249 = vrot.lane.b32.xlu0 %v193, 108
        %v250 = vpop.permute.xlu0 %249
        %vm251 = vcmask 883712
        %v252 = vsel %vm251, %v246, %v248
        %v253 = vsel %vm251, %v248, %v250
        %257 = vrot.lane.b32.xlu0 %v191, 92
        %v258 = vpop.permute.xlu0 %257
        %259 = vrot.lane.b32.xlu0 %v192, 92
        %v260 = vpop.permute.xlu0 %259
        %261 = vrot.lane.b32.xlu0 %v193, 92
        %v262 = vpop.permute.xlu0 %261
        %vm263 = vcmask 752640
        %v264 = vsel %vm263, %v258, %v260
        %v265 = vsel %vm263, %v260, %v262
        %269 = vrot.lane.b32.xlu0 %v191, 91
        %v270 = vpop.permute.xlu0 %269
        %271 = vrot.lane.b32.xlu0 %v192, 91
        %v272 = vpop.permute.xlu0 %271
        %273 = vrot.lane.b32.xlu0 %v193, 91
        %v274 = vpop.permute.xlu0 %273
        %vm275 = vcmask 744448
        %v276 = vsel %vm275, %v270, %v272
        %v277 = vsel %vm275, %v272, %v274
        %281 = vrot.lane.b32.xlu0 %v191, 90
        %v282 = vpop.permute.xlu0 %281
        %283 = vrot.lane.b32.xlu0 %v192, 90
        %v284 = vpop.permute.xlu0 %283
        %285 = vrot.lane.b32.xlu0 %v193, 90
        %v286 = vpop.permute.xlu0 %285
        %vm287 = vcmask 736256
        %v288 = vsel %vm287, %v282, %v284
        %v289 = vsel %vm287, %v284, %v286
        %294 = vset.pattern.permute.xlu0 0
        %295 = vperm.xlu0 %294, %v189
        %v296 = vpop.permute.xlu0 %295
        %299 = vset.pattern.permute.xlu0 0
        %300 = vperm.xlu0 %299, %v190
        %v301 = vpop.permute.xlu0 %300
        %vm303 = vcmask 588800
        %v305 = vsel %vm303, %v187, 0
        %v308 = vsel %vm303, %v188, 0
        %310 = vmatprep.subr.mxu0 %v192
        %311 = vmatpush1.msra.mxu0 %v191
        %312 = vmatprep.subr.mxu0 %v205
        %313 = vmatpush1.msra.mxu0 %v204
        %314 = vmatprep.subr.mxu0 %v217
        %315 = vmatpush1.msra.mxu0 %v216
        %316 = vmatprep.subr.mxu0 %v229
        %317 = vmatpush1.msra.mxu0 %v228
        %318 = vmatprep.subr.mxu0 %v241
        %319 = vmatpush1.msra.mxu0 %v240
        %320 = vmatprep.subr.mxu0 %v253
        %321 = vmatpush1.msra.mxu0 %v252
        %322 = vmatprep.subr.mxu0 %v265
        %323 = vmatpush1.msra.mxu0 %v264
        %324 = vmatprep.subr.mxu0 %v277
        %325 = vmatpush1.msra.mxu0 %v276
        %326 = vmatprep.subr.mxu0 %v289
        %327 = vmatpush1.msra.mxu0 %v288
        %328 = vmatprep.subr.mxu0 0.0
        %329 = vmatpush1.msra.mxu0 0.0
        %330 = vmatprep.subr.mxu0 0.0
        %331 = vmatpush1.msra.mxu0 0.0
        %332 = vmatprep.subr.mxu0 0.0
        %333 = vmatpush1.msra.mxu0 0.0
        %334 = vmatprep.subr.mxu0 0.0
        %335 = vmatpush1.msra.mxu0 0.0
        %336 = vmatprep.subr.mxu0 0.0
        %337 = vmatpush1.msra.mxu0 0.0
        %338 = vmatprep.subr.mxu0 0.0
        %339 = vmatpush1.msra.mxu0 0.0
        %340 = vmatprep.subr.mxu0 0.0
        %341 = vmatpush1.msra.mxu0 0.0
        %342 = vmatprep.subr.mxu0 0.0
        %343 = vmatpush1.msra.mxu0 0.0
        %344 = vmatprep.subr.mxu0 0.0
        %345 = vmatpush1.msra.mxu0 0.0
        %346 = vmatprep.subr.mxu0 0.0
        %347 = vmatpush1.msra.mxu0 0.0
        %348 = vmatprep.subr.mxu0 0.0
        %349 = vmatpush1.msra.mxu0 0.0
        %350 = vmatprep.subr.mxu0 0.0
        %351 = vmatpush1.msra.mxu0 0.0
        %352 = vmatprep.subr.mxu0 0.0
        %353 = vmatpush1.msra.mxu0 0.0
        %354 = vmatprep.subr.mxu0 0.0
        %355 = vmatpush1.msra.mxu0 0.0
        %356 = vmatprep.subr.mxu0 0.0
        %357 = vmatpush1.msra.mxu0 0.0
        %358 = vmatprep.subr.mxu0 0.0
        %359 = vmatpush1.msra.mxu0 0.0
        %360 = vmatprep.subr.mxu0 0.0
        %361 = vmatpush1.msra.mxu0 0.0
        %362 = vmatprep.subr.mxu0 0.0
        %363 = vmatpush1.msra.mxu0 0.0
        %364 = vmatprep.subr.mxu0 0.0
        %365 = vmatpush1.msra.mxu0 0.0
        %366 = vmatprep.subr.mxu0 0.0
        %367 = vmatpush1.msra.mxu0 0.0
        %368 = vmatprep.subr.mxu0 0.0
        %369 = vmatpush1.msra.mxu0 0.0
        %370 = vmatprep.subr.mxu0 0.0
        %371 = vmatpush1.msra.mxu0 0.0
        %372 = vmatprep.subr.mxu0 0.0
        %373 = vmatpush1.msra.mxu0 0.0
        %374 = vmatprep.mubr.f32.mxu0 0.0
        %375 = vmatmul.mubr.f32.gmra.mrb[0].mxu0 %v305
        %v376 = vpop.f32.mrb[0].mxu0
        %v377 = vadd.f32 %v296, %v376
        %v378 = vpop.f32.mrb[0].mxu0
        %v379 = vadd.f32 %v296, %v378
        %380 = vmatprep.mubr.f32.mxu0 0.0
        %381 = vmatmul.mubr.f32.gmra.mrb[0].mxu0 %v308
        %v382 = vpop.f32.mrb[0].mxu0
        %v383 = vadd.f32 %v301, %v382
        %v384 = vpop.f32.mrb[0].mxu0
        %v385 = vadd.f32 %v301, %v384
        %386 = vdwg.mxu0
        %387 = vmatprep.subr.mxu0 0.0
        %388 = vmatpush1.msra.mxu0 %v193
        %389 = vmatprep.subr.mxu0 0.0
        %390 = vmatpush1.msra.mxu0 %v202
        %391 = vmatprep.subr.mxu0 0.0
        %392 = vmatpush1.msra.mxu0 %v214
        %393 = vmatprep.subr.mxu0 0.0
        %394 = vmatpush1.msra.mxu0 %v226
        %395 = vmatprep.subr.mxu0 0.0
        %396 = vmatpush1.msra.mxu0 %v238
        %397 = vmatprep.subr.mxu0 0.0
        %398 = vmatpush1.msra.mxu0 %v250
        %399 = vmatprep.subr.mxu0 0.0
        %400 = vmatpush1.msra.mxu0 %v262
        %401 = vmatprep.subr.mxu0 0.0
        %402 = vmatpush1.msra.mxu0 %v274
        %403 = vmatprep.subr.mxu0 0.0
        %404 = vmatpush1.msra.mxu0 %v286
        %405 = vmatprep.subr.mxu0 0.0
        %406 = vmatpush1.msra.mxu0 0.0
        %407 = vmatprep.subr.mxu0 0.0
        %408 = vmatpush1.msra.mxu0 0.0
        %409 = vmatprep.subr.mxu0 0.0
        %410 = vmatpush1.msra.mxu0 0.0
        %411 = vmatprep.subr.mxu0 0.0
        %412 = vmatpush1.msra.mxu0 0.0
        %413 = vmatprep.subr.mxu0 0.0
        %414 = vmatpush1.msra.mxu0 0.0
        %415 = vmatprep.subr.mxu0 0.0
        %416 = vmatpush1.msra.mxu0 0.0
        %417 = vmatprep.subr.mxu0 0.0
        %418 = vmatpush1.msra.mxu0 0.0
        %419 = vmatprep.subr.mxu0 0.0
        %420 = vmatpush1.msra.mxu0 0.0
        %421 = vmatprep.subr.mxu0 0.0
        %422 = vmatpush1.msra.mxu0 0.0
        %423 = vmatprep.subr.mxu0 0.0
        %424 = vmatpush1.msra.mxu0 0.0
        %425 = vmatprep.subr.mxu0 0.0
        %426 = vmatpush1.msra.mxu0 0.0
        %427 = vmatprep.subr.mxu0 0.0
        %428 = vmatpush1.msra.mxu0 0.0
        %429 = vmatprep.subr.mxu0 0.0
        %430 = vmatpush1.msra.mxu0 0.0
        %431 = vmatprep.subr.mxu0 0.0
        %432 = vmatpush1.msra.mxu0 0.0
        %433 = vmatprep.subr.mxu0 0.0
        %434 = vmatpush1.msra.mxu0 0.0
        %435 = vmatprep.subr.mxu0 0.0
        %436 = vmatpush1.msra.mxu0 0.0
        %437 = vmatprep.subr.mxu0 0.0
        %438 = vmatpush1.msra.mxu0 0.0
        %439 = vmatprep.subr.mxu0 0.0
        %440 = vmatpush1.msra.mxu0 0.0
        %441 = vmatprep.subr.mxu0 0.0
        %442 = vmatpush1.msra.mxu0 0.0
        %443 = vmatprep.subr.mxu0 0.0
        %444 = vmatpush1.msra.mxu0 0.0
        %445 = vmatprep.subr.mxu0 0.0
        %446 = vmatpush1.msra.mxu0 0.0
        %447 = vmatprep.subr.mxu0 0.0
        %448 = vmatpush1.msra.mxu0 0.0
        %449 = vmatprep.subr.mxu0 0.0
        %450 = vmatpush1.msra.mxu0 0.0
        %451 = vmatprep.mubr.f32.mxu0 0.0
        %452 = vmatmul.mubr.f32.gmra.mrb[0].mxu0 %v305
        %v453 = vpop.f32.mrb[0].mxu0
        %v454 = vadd.f32 %v296, %v453
        %v455 = vpop.f32.mrb[0].mxu0
        %456 = vmatprep.mubr.f32.mxu0 0.0
        %457 = vmatmul.mubr.f32.gmra.mrb[0].mxu0 %v308
        %v458 = vpop.f32.mrb[0].mxu0
        %v459 = vadd.f32 %v301, %v458
        %v460 = vpop.f32.mrb[0].mxu0
        %461 = vdwg.mxu0
        %v462 = vmax.f32 %v377, %v383
        %v463 = vmax.f32 %v379, %v385
        %v464 = vmax.f32 %v454, %v459
        %465 = vst [vmem:[%s186] sm:$0xff] %v462
        %466 = vst [vmem:[%s186 + $0x8] sm:$0xff] %v463
        %vm467 = vcmask 261120
        %468 = vst.msk [vmem:[%s186 + $0x10] sm:$0xff] %vm467, %v464
        %s469 = sand.u32 %s96, 1
        %s470 = scalar_lea.sflag [#allocation4], %s469
        %s471 = sand.u32 %s96, 1
        %s472 = smul.addr %s471, 24
        %s473 = scalar_lea.vmem [#allocation5], %s472
        // Predicated region
        $region37: #{tpu_custom_call.1} parent=31 // pred_check
          %p474 = pneg %p106
        $region38: #{tpu_custom_call.1} parent=31 // pred_check_branch
          %476 = sbr.rel (%p474) target = $region40
        $region39: #{tpu_custom_call.1} parent=31 // pred_region
          %s478 = ssub.s32 384, 384
          %479 = vsyncadd %s470, %s478
          %s480 = smul.addr %s20, 3
          %s481 = smul.addr %s480, 128
          %s482 = scalar_lea.hbm %s3, %s481
          %s484 = sshll.u32 %s473, 4
          %s485 = int_to_ptr.vmem [resolvable:$true] %s484
          %487 = dma.vmem_to_hbm [thread:$0]  %s485, 384, %s482, %s470
        $region40: #{tpu_custom_call.1} parent=31 // pred_fallthru
          _
      $region32: #{tpu_custom_call.1} parent=5 // pred_fallthru
        _
      %p488 = scmp.le.s32.totalorder 2, %s15
      // Predicated region
      $region41: #{tpu_custom_call.1} parent=5 // pred_check
        %p489 = pneg %p488
      $region42: #{tpu_custom_call.1} parent=5 // pred_check_branch
        %491 = sbr.rel (%p489) target = $region44
      $region43: #{tpu_custom_call.1} parent=5 // pred_region
        %s492 = ssub.s32 %s15, 2
        // Predicated region
        $region45: #{tpu_custom_call.1} parent=43 // pred_check
          %p493 = pneg %p112
        $region46: #{tpu_custom_call.1} parent=43 // pred_check_branch
          %495 = sbr.rel (%p493) target = $region48
        $region47: #{tpu_custom_call.1} parent=43 // pred_region
          %s496 = sand.u32 %s97, 1
          %s497 = scalar_lea.sflag [#allocation4], %s496
          %s498 = sand.u32 %s97, 1
          %s499 = smul.addr %s498, 24
          %s500 = scalar_lea.vmem [#allocation5], %s499
          %501 = dma.done %s497, 384
        $region48: #{tpu_custom_call.1} parent=43 // pred_fallthru
          _
      $region44: #{tpu_custom_call.1} parent=5 // pred_fallthru
        _
    $region6: #{tpu_custom_call.1} parent=1 // loop_footer
      %s19 = sadd.s32 1, %s15
    $region7: #{tpu_custom_call.1} parent=1 // loop_footer_branch
      %14 = sbr.rel target = $region3
    $region8: #{tpu_custom_call.1} parent=1 // loop_exit
      _
    %502 = vsyncpa [#allocation3], 1
    %s503 = scalar_lea.sflag [#allocation3], 1
    %504 = vsyncpa %s503, 1
    %505 = vsyncpa [#allocation4], 1
    %s506 = scalar_lea.sflag [#allocation4], 1
    %507 = vsyncpa %s506, 1

</llo_original>
